<compile_context>
chip_gen: v7x
topology: tpu7x:2x2x1
jax: 0.10.0
libtpu: 0.0.40
codegen_flags: <defaults>
</compile_context>

<pallas_src>
import functools
import math

import jax
import jax.numpy as jnp
from jax import lax
from jax.experimental import pallas as pl
from jax.experimental.pallas import tpu as pltpu


# --------------------------------------------------------------------------
# Kernels
# --------------------------------------------------------------------------
def _rmsnorm_kernel(x_ref, w_ref, o_ref, *, eps, dim):
    # x_ref: (tile_rows, dim) input tile, w_ref: (1, dim), o_ref: (tile_rows, dim)
    x_in = x_ref[...]
    x = x_in.astype(jnp.float32)                              # x.float()
    ssq = jnp.sum(x * x, axis=-1, keepdims=True)              # (tile_rows, 1)
    ms = ssq * (1.0 / dim)                                     # mean(x^2, -1)
    normed = (x * lax.rsqrt(ms + eps)).astype(x_in.dtype)      # .type_as(x)
    o_ref[...] = (normed * w_ref[...]).astype(o_ref.dtype)     # * weight


def _rmsnorm_fold_kernel(x_ref, w_ref, seg_ref, o_ref, *, eps, dim):
    # Small-dim path: `fold` original rows packed along the lane axis.
    # seg_ref: (dim_f, dim_f) block-diagonal ones, built on the host, resident
    # in VMEM (constant index_map) -- the per-segment sum-of-squares runs on
    # the MXU and its result is already broadcast across each segment.
    x_in = x_ref[...]
    x = x_in.astype(jnp.float32)
    xsq = x * x
    ssq = jnp.dot(xsq, seg_ref[...], preferred_element_type=jnp.float32)
    ms = ssq * (1.0 / dim)
    normed = (x * lax.rsqrt(ms + eps)).astype(x_in.dtype)
    o_ref[...] = (normed * w_ref[...]).astype(o_ref.dtype)


# --------------------------------------------------------------------------
# Helpers
# --------------------------------------------------------------------------
def _sublane_pack(dtype):
    # 8 for f32, 16 for bf16, 32 for int8/fp8 -- avoids half-empty vregs.
    return max(8, 32 // max(jnp.dtype(dtype).itemsize, 1))


def _vmem_capacity_bytes():
    try:
        return int(pltpu.get_tpu_info().vmem_capacity_bytes)
    except Exception:
        return 64 * 1024 * 1024  # conservative (v7x per-TC VMEM)


# --------------------------------------------------------------------------
# Wrapper
# --------------------------------------------------------------------------
def rmsnorm(x, weight, eps=1e-6, *, tile_rows=None, out_dtype=None):
    """RMSNorm over the last axis of x. weight has shape (dim,).

    out_dtype: optional override (e.g. jnp.bfloat16) to avoid PyTorch-style
    promotion to f32 and cut HBM write traffic; default matches the module.
    """
    dim = x.shape[-1]
    assert weight.shape == (dim,)

    orig_shape = x.shape
    rows = 1
    for s in orig_shape[:-1]:
        rows *= s

    # PyTorch type promotion: normed (dtype of x) * weight (e.g. float32).
    if out_dtype is None:
        out_dtype = jnp.promote_types(x.dtype, weight.dtype)

    # ---- Lane-dense folding for small dims -------------------------------
    # Make the lane (last) dim a multiple of 128 so stores are unmasked; the
    # per-row reduction is done in-kernel with a segment matmul on the MXU.
    fold = 1
    if dim < 128:
        f = math.lcm(dim, 128) // dim
        if f * dim <= 512:  # keep the seg matrix (dim_f x dim_f f32) small
            fold = f

    x2d = x.reshape(rows, dim)
    pad_rows = 0
    if fold > 1:
        pad_rows = (-rows) % fold
        if pad_rows:
            # Zero padding keeps rsqrt finite; padded rows are sliced off.
            x2d = jnp.pad(x2d, ((0, pad_rows), (0, 0)))
    rows_p = rows + pad_rows
    rows_f = rows_p // fold
    dim_f = dim * fold

    x2d = x2d.reshape(rows_f, dim_f)
    w2d = (weight if fold == 1 else jnp.tile(weight, fold)).reshape(1, dim_f)

    in_item = jnp.dtype(x.dtype).itemsize
    out_item = jnp.dtype(out_dtype).itemsize
    sub = _sublane_pack(x.dtype)
    vmem_cap = _vmem_capacity_bytes()
    budget = int(vmem_cap * 0.8)  # leave >=20% for compiler scratch / sems

    if tile_rows is None:
        # Per-row VMEM cost: double-buffered in + out blocks plus ~2 f32-wide
        # streamed temporaries (Mosaic does not materialize full-tile f32
        # copies of the whole elementwise chain).
        per_row = dim_f * (2 * in_item + 2 * out_item + 2 * 4)
        cap_rows = max(sub, budget // max(per_row, 1))
        # Keep the input block in the ~2-8 MiB sweet spot; allow many rows
        # for narrow dim_f (no hard 1024-row cap).
        cap_rows = min(cap_rows,
                       max(sub, (8 * 1024 * 1024) // max(dim_f * in_item, 1)))
        tile_rows = min(cap_rows, 8192)
        tile_rows = max(sub, (tile_rows // sub) * sub)

    if rows_f <= tile_rows:
        # Single block covering all rows (block dim == full array dim is legal).
        tile_rows = rows_f

    grid = (pl.cdiv(rows_f, tile_rows),)

    # Scoped VMEM limit sized to the chosen tile (with headroom), capped at
    # 0.8 x physical VMEM (important on v7x's 64 MiB per-TC).
    in_blk = tile_rows * dim_f * in_item
    out_blk = tile_rows * dim_f * out_item
    tmp_f32 = 2 * tile_rows * dim_f * 4
    seg_bytes = dim_f * dim_f * 4 if fold > 1 else 0
    need = 2 * (in_blk + out_blk) + tmp_f32 + seg_bytes + 2 * dim_f * 4 + (2 << 20)
    vmem_limit = int(min(max(need, 32 * 1024 * 1024), budget))

    x_spec = pl.BlockSpec((tile_rows, dim_f), lambda i: (i, 0))
    w_spec = pl.BlockSpec((1, dim_f), lambda i: (0, 0))
    out_spec = pl.BlockSpec((tile_rows, dim_f), lambda i: (i, 0))

    if fold > 1:
        # Block-diagonal "segment sum" matrix, built once on the host.
        ri = jnp.arange(dim_f, dtype=jnp.int32) // dim
        seg = (ri[:, None] == ri[None, :]).astype(jnp.float32)
        kernel = functools.partial(_rmsnorm_fold_kernel, eps=eps, dim=dim)
        in_specs = [x_spec, w_spec,
                    pl.BlockSpec((dim_f, dim_f), lambda i: (0, 0))]
        args = (x2d, w2d, seg)
    else:
        kernel = functools.partial(_rmsnorm_kernel, eps=eps, dim=dim)
        in_specs = [x_spec, w_spec]
        args = (x2d, w2d)

    out = pl.pallas_call(
        kernel,
        out_shape=jax.ShapeDtypeStruct((rows_f, dim_f), out_dtype),
        grid_spec=pltpu.PrefetchScalarGridSpec(
            num_scalar_prefetch=0,
            grid=grid,
            in_specs=in_specs,
            out_specs=out_spec,
        ),
        compiler_params=pltpu.CompilerParams(
            dimension_semantics=("parallel",),
            vmem_limit_bytes=vmem_limit,
        ),
    )(*args)

    out = out.reshape(rows_p, dim)
    if pad_rows:
        out = out[:rows]
    return out.reshape(orig_shape[:-1] + (dim,))


# --------------------------------------------------------------------------
# Reference + self-check
# --------------------------------------------------------------------------
def _reference(x, weight, eps):
    xf = x.astype(jnp.float32)
    normed = xf * lax.rsqrt(jnp.mean(xf * xf, axis=-1, keepdims=True) + eps)
    return normed.astype(x.dtype) * weight


if __name__ == "__main__":
    key = jax.random.PRNGKey(0)
    eps = 1e-6

    # Primary check: module-consistent small shape (batch=2, seq=8, dim=32)
    # exercising the folded (lane-dense, MXU segment-sum) path.
    batch, seq, dim = 2, 8, 32
    x = jax.random.normal(key, (batch, seq, dim), dtype=jnp.float32)
    weight = jnp.ones((dim,), dtype=jnp.float32)   # as in the module's __init__

    out = jax.block_until_ready(rmsnorm(x, weight, eps))
    ref = _reference(x, weight, eps)
    assert out.shape == ref.shape and out.dtype == ref.dtype
    assert jnp.allclose(out, ref, atol=1e-5, rtol=1e-5)

    # Secondary check: fold==1 path (dim >= 128), bf16 activations with f32
    # weight (type_as cast chain + PyTorch promotion to f32 output).
    k2 = jax.random.PRNGKey(0)
    dim2 = 256
    x2 = jax.random.normal(k2, (2, 8, dim2), dtype=jnp.bfloat16)
    w2 = jnp.ones((dim2,), dtype=jnp.float32)
    out2 = jax.block_until_ready(rmsnorm(x2, w2, eps))
    ref2 = _reference(x2, w2, eps)
    assert out2.shape == ref2.shape and out2.dtype == ref2.dtype
    assert jnp.allclose(out2, ref2, atol=1e-2, rtol=1e-2)

    # Tertiary check: generalized fold (dim=48 -> fold=8, dim_f=384) with a
    # row count that needs padding (rows=21, pad to 24).
    k3 = jax.random.PRNGKey(0)
    x3 = jax.random.normal(k3, (3, 7, 48), dtype=jnp.float32)
    w3 = jnp.ones((48,), dtype=jnp.float32)
    out3 = jax.block_until_ready(rmsnorm(x3, w3, eps))
    ref3 = _reference(x3, w3, eps)
    assert out3.shape == ref3.shape and out3.dtype == ref3.dtype
    assert jnp.allclose(out3, ref3, atol=1e-5, rtol=1e-5)

    print("KERNEL_OK")
</pallas_src>

<mosaic_0001>
module attributes {stable_mosaic.version = 11 : i64} {
  func.func @_rmsnorm_fold_kernel(%arg0: i32, %arg1: memref<4x128xf32, #tpu.memory_space<vmem>>, %arg2: memref<1x128xf32, #tpu.memory_space<vmem>>, %arg3: memref<128x128xf32, #tpu.memory_space<vmem>>, %arg4: memref<4x128xf32, #tpu.memory_space<vmem>>) attributes {dimension_semantics = [#tpu.dimension_semantics<parallel>], iteration_bounds = array<i64: 1>, scalar_prefetch = 0 : i64, scratch_operands = 0 : i64, tpu.core_type = #tpu.core_type<tc>, window_params = [{transform_indices = @transform_0, window_bounds = array<i64: 4, 128>}, {pipeline_mode = #tpu.pipeline_mode<synchronous>, transform_indices = @transform_1, window_bounds = array<i64: 1, 128>}, {pipeline_mode = #tpu.pipeline_mode<synchronous>, transform_indices = @transform_2, window_bounds = array<i64: 128, 128>}, {transform_indices = @transform_3, window_bounds = array<i64: 4, 128>}]} {
    %c0 = arith.constant 0 : index
    %c0_0 = arith.constant 0 : index
    %0 = vector.load %arg1[%c0, %c0_0] : memref<4x128xf32, #tpu.memory_space<vmem>>, vector<4x128xf32>
    %1 = arith.mulf %0, %0 : vector<4x128xf32>
    %c0_1 = arith.constant 0 : index
    %c0_2 = arith.constant 0 : index
    %2 = vector.load %arg3[%c0_1, %c0_2] : memref<128x128xf32, #tpu.memory_space<vmem>>, vector<128x128xf32>
    %cst = arith.constant dense<0.000000e+00> : vector<4x128xf32>
    %3 = tpu.matmul %1, %2, %cst {dimension_numbers = #tpu.dot_dimension_numbers<[1], [0], [0], [1], [0, 0, 1, 1], [], []>} : vector<4x128xf32>, vector<128x128xf32>, vector<4x128xf32> -> vector<4x128xf32>
    %cst_3 = arith.constant 3.125000e-02 : f32
    %4 = vector.broadcast %cst_3 : f32 to vector<4x128xf32>
    %5 = arith.mulf %3, %4 : vector<4x128xf32>
    %cst_4 = arith.constant 9.99999997E-7 : f32
    %6 = vector.broadcast %cst_4 : f32 to vector<4x128xf32>
    %7 = arith.addf %5, %6 : vector<4x128xf32>
    %8 = math.rsqrt %7 : vector<4x128xf32>
    %9 = arith.mulf %0, %8 : vector<4x128xf32>
    %c0_5 = arith.constant 0 : index
    %c0_6 = arith.constant 0 : index
    %10 = vector.load %arg2[%c0_5, %c0_6] : memref<1x128xf32, #tpu.memory_space<vmem>>, vector<1x128xf32>
    %11 = vector.broadcast %10 : vector<1x128xf32> to vector<4x128xf32>
    %12 = arith.mulf %9, %11 : vector<4x128xf32>
    %c0_7 = arith.constant 0 : index
    %c0_8 = arith.constant 0 : index
    %13 = vector.load %arg4[%c0_7, %c0_8] : memref<4x128xf32, #tpu.memory_space<vmem>>, vector<4x128xf32>
    tpu.vector_store %arg4[%c0_7, %c0_8], %12 {strides = array<i32>} : memref<4x128xf32, #tpu.memory_space<vmem>>, vector<4x128xf32>,
    return
  }
  func.func @transform_0(%arg0: i32) -> (i32, i32) {
    %c0_i32 = arith.constant 0 : i32
    %c0_i32_0 = arith.constant 0 : i32
    return %arg0, %c0_i32 : i32, i32
  }
  func.func @transform_1(%arg0: i32) -> (i32, i32) {
    %c0_i32 = arith.constant 0 : i32
    %c0_i32_0 = arith.constant 0 : i32
    %c0_i32_1 = arith.constant 0 : i32
    return %c0_i32, %c0_i32_0 : i32, i32
  }
  func.func @transform_2(%arg0: i32) -> (i32, i32) {
    %c0_i32 = arith.constant 0 : i32
    %c0_i32_0 = arith.constant 0 : i32
    %c0_i32_1 = arith.constant 0 : i32
    return %c0_i32, %c0_i32_0 : i32, i32
  }
  func.func @transform_3(%arg0: i32) -> (i32, i32) {
    %c0_i32 = arith.constant 0 : i32
    %c0_i32_0 = arith.constant 0 : i32
    return %arg0, %c0_i32 : i32, i32
  }
}

</mosaic_0001>

<llo_original>
// kernel: tpu_custom_call.1
$region0: #{tpu_custom_call.1}
  #allocation0 [shape = 'u32[]', space=smem, size = 0x4, offset = 0x4, fixed_abs, tag = 'smem constant byte address 0x4 - core index']
  #allocation1 [shape = 'u32[144,128]{1,0:T(1,128)}', space=vmem, size = 0x12000, scoped, tag = 'internal scratch']
  %s0 = inlined_call_operand.hbm [shape: f32[4,128], index: 0, kind: input, shape index: {}]
  %s1 = inlined_call_operand.vmem [shape: f32[1,128], index: 1, kind: input, shape index: {}]
  %s2 = inlined_call_operand.hbm [shape: f32[128,128], index: 2, kind: input, shape index: {}]
  %s3 = inlined_call_operand.hbm [shape: f32[4,128], index: 3, kind: output, shape index: {}]
  %s4 = sld [smem:[#allocation0]]
  $region30: #{tpu_custom_call.1} parent=0
    _
  %s6 = ssub.s32 1, %s4
  %s7 = scalar_select 0, %s6, %s4
  $region1: #{tpu_custom_call.1} parent=0
    #allocation2 [shape = 'u8[2048]{0}', space=vmem, size = 0x800, scoped, tag = 'input window, operand 0, single buffered']
    #allocation3 [shape = 's32[1]{0}', space=sflag, size = 0x4, scoped, tag = 'scoped memory for tpu_custom_call.1']
    #allocation4 [shape = 's32[1]{0}', space=sflag, size = 0x4, scoped, tag = 'scoped memory for tpu_custom_call.1']
    #allocation5 [shape = 'u8[65536]{0}', space=vmem, size = 0x10000, scoped, tag = 'input window, operand 2, single buffered']
    #allocation6 [shape = 's32[1]{0}', space=sflag, size = 0x4, scoped, tag = 'scoped memory for tpu_custom_call.1']
    #allocation7 [shape = 'u8[2048]{0}', space=vmem, size = 0x800, scoped, tag = 'output window, operand 0, single buffered']
    %8 = vsyncpa [#allocation3], 0
    %9 = vsyncpa [#allocation6], 0
    %10 = vsyncpa [#allocation4], 0
    // Predicated region
    $region2: #{tpu_custom_call.1} parent=1 // pred_check
      _
    $region3: #{tpu_custom_call.1} parent=1 // pred_check_branch
      %12 = sbr.rel (0) target = $region5
    $region4: #{tpu_custom_call.1} parent=1 // pred_region
      %s14 = ssub.s32 64, 64
      %15 = vsyncadd [#allocation3], %s14
      %s17 = sshll.u32 [#allocation2], 4
      %s18 = int_to_ptr.vmem [resolvable:$true] %s17
      %20 = dma.hbm_to_vmem [thread:$0]  %s0, 64, %s18, [#allocation3]
    $region5: #{tpu_custom_call.1} parent=1 // pred_fallthru
      _
    // Predicated region
    $region6: #{tpu_custom_call.1} parent=1 // pred_check
      _
    $region7: #{tpu_custom_call.1} parent=1 // pred_check_branch
      %22 = sbr.rel (0) target = $region9
    $region8: #{tpu_custom_call.1} parent=1 // pred_region
      _
    $region9: #{tpu_custom_call.1} parent=1 // pred_fallthru
      _
    // Predicated region
    $region10: #{tpu_custom_call.1} parent=1 // pred_check
      _
    $region11: #{tpu_custom_call.1} parent=1 // pred_check_branch
      %24 = sbr.rel (0) target = $region13
    $region12: #{tpu_custom_call.1} parent=1 // pred_region
      %s26 = ssub.s32 2048, 2048
      %27 = vsyncadd [#allocation6], %s26
      %s28 = sshll.u32 [#allocation5], 4
      %s29 = int_to_ptr.vmem [resolvable:$true] %s28
      %34 = dma.hbm_to_vmem [thread:$0]  %s2, 2048, %s29, [#allocation6], 128, 128, 8
    $region13: #{tpu_custom_call.1} parent=1 // pred_fallthru
      _
    // Predicated region
    $region14: #{tpu_custom_call.1} parent=1 // pred_check
      _
    $region15: #{tpu_custom_call.1} parent=1 // pred_check_branch
      %36 = sbr.rel (0) target = $region17
    $region16: #{tpu_custom_call.1} parent=1 // pred_region
      %37 = dma.done [#allocation3], 64
    $region17: #{tpu_custom_call.1} parent=1 // pred_fallthru
      _
    // Predicated region
    $region18: #{tpu_custom_call.1} parent=1 // pred_check
      _
    $region19: #{tpu_custom_call.1} parent=1 // pred_check_branch
      %39 = sbr.rel (0) target = $region21
    $region20: #{tpu_custom_call.1} parent=1 // pred_region
      %40 = dma.done [#allocation6], 2048
    $region21: #{tpu_custom_call.1} parent=1 // pred_fallthru
      _
    %v41 = vld [vmem:[#allocation2] sm:$0xf]
    %v42 = vmul.f32 %v41, %v41
    %v43 = vld [vmem:[#allocation5] sm:$0xff]
    %v44 = vld [vmem:[#allocation5 + $0x8] sm:$0xff]
    %v45 = vld [vmem:[#allocation5 + $0x10] sm:$0xff]
    %v46 = vld [vmem:[#allocation5 + $0x18] sm:$0xff]
    %v47 = vld [vmem:[#allocation5 + $0x20] sm:$0xff]
    %v48 = vld [vmem:[#allocation5 + $0x28] sm:$0xff]
    %v49 = vld [vmem:[#allocation5 + $0x30] sm:$0xff]
    %v50 = vld [vmem:[#allocation5 + $0x38] sm:$0xff]
    %v51 = vld [vmem:[#allocation5 + $0x40] sm:$0xff]
    %v52 = vld [vmem:[#allocation5 + $0x48] sm:$0xff]
    %v53 = vld [vmem:[#allocation5 + $0x50] sm:$0xff]
    %v54 = vld [vmem:[#allocation5 + $0x58] sm:$0xff]
    %v55 = vld [vmem:[#allocation5 + $0x60] sm:$0xff]
    %v56 = vld [vmem:[#allocation5 + $0x68] sm:$0xff]
    %v57 = vld [vmem:[#allocation5 + $0x70] sm:$0xff]
    %v58 = vld [vmem:[#allocation5 + $0x78] sm:$0xff]
    %59 = vmatprep.subr.mxu0 0.0
    %60 = vmatpush1.msra.mxu0 %v43
    %61 = vmatprep.subr.mxu0 0.0
    %62 = vmatpush1.msra.mxu0 %v44
    %63 = vmatprep.subr.mxu0 0.0
    %64 = vmatpush1.msra.mxu0 %v45
    %65 = vmatprep.subr.mxu0 0.0
    %66 = vmatpush1.msra.mxu0 %v46
    %67 = vmatprep.subr.mxu0 0.0
    %68 = vmatpush1.msra.mxu0 %v47
    %69 = vmatprep.subr.mxu0 0.0
    %70 = vmatpush1.msra.mxu0 %v48
    %71 = vmatprep.subr.mxu0 0.0
    %72 = vmatpush1.msra.mxu0 %v49
    %73 = vmatprep.subr.mxu0 0.0
    %74 = vmatpush1.msra.mxu0 %v50
    %75 = vmatprep.subr.mxu0 0.0
    %76 = vmatpush1.msra.mxu0 %v51
    %77 = vmatprep.subr.mxu0 0.0
    %78 = vmatpush1.msra.mxu0 %v52
    %79 = vmatprep.subr.mxu0 0.0
    %80 = vmatpush1.msra.mxu0 %v53
    %81 = vmatprep.subr.mxu0 0.0
    %82 = vmatpush1.msra.mxu0 %v54
    %83 = vmatprep.subr.mxu0 0.0
    %84 = vmatpush1.msra.mxu0 %v55
    %85 = vmatprep.subr.mxu0 0.0
    %86 = vmatpush1.msra.mxu0 %v56
    %87 = vmatprep.subr.mxu0 0.0
    %88 = vmatpush1.msra.mxu0 %v57
    %89 = vmatprep.subr.mxu0 0.0
    %90 = vmatpush1.msra.mxu0 %v58
    %91 = vmatprep.subr.mxu0 0.0
    %92 = vmatpush1.msra.mxu0 0.0
    %93 = vmatprep.subr.mxu0 0.0
    %94 = vmatpush1.msra.mxu0 0.0
    %95 = vmatprep.subr.mxu0 0.0
    %96 = vmatpush1.msra.mxu0 0.0
    %97 = vmatprep.subr.mxu0 0.0
    %98 = vmatpush1.msra.mxu0 0.0
    %99 = vmatprep.subr.mxu0 0.0
    %100 = vmatpush1.msra.mxu0 0.0
    %101 = vmatprep.subr.mxu0 0.0
    %102 = vmatpush1.msra.mxu0 0.0
    %103 = vmatprep.subr.mxu0 0.0
    %104 = vmatpush1.msra.mxu0 0.0
    %105 = vmatprep.subr.mxu0 0.0
    %106 = vmatpush1.msra.mxu0 0.0
    %107 = vmatprep.subr.mxu0 0.0
    %108 = vmatpush1.msra.mxu0 0.0
    %109 = vmatprep.subr.mxu0 0.0
    %110 = vmatpush1.msra.mxu0 0.0
    %111 = vmatprep.subr.mxu0 0.0
    %112 = vmatpush1.msra.mxu0 0.0
    %113 = vmatprep.subr.mxu0 0.0
    %114 = vmatpush1.msra.mxu0 0.0
    %115 = vmatprep.subr.mxu0 0.0
    %116 = vmatpush1.msra.mxu0 0.0
    %117 = vmatprep.subr.mxu0 0.0
    %118 = vmatpush1.msra.mxu0 0.0
    %119 = vmatprep.subr.mxu0 0.0
    %120 = vmatpush1.msra.mxu0 0.0
    %121 = vmatprep.subr.mxu0 0.0
    %122 = vmatpush1.msra.mxu0 0.0
    %123 = vmatprep.mubr.f32.mxu0 0.0
    %124 = vmatmul.mubr.f32.gmra.mrb[0].mxu0 %v42
    %v125 = vpop.f32.mrb[0].mxu0
    %v126 = vadd.f32 0.0, %v125
    %v127 = vpop.f32.mrb[0].mxu0
    %128 = vdwg.mxu0
    %v129 = vmul.f32 %v126, 0.03125
    %v130 = vadd.f32 %v129, 1e-06
    %v131 = vrsqrt.pop %v130
    %v132 = vmul.f32 %v41, %v131
    %v133 = vld [vmem:[%s1] sm:$0x1]
    %v135 = vlaneseq
    %v136 = vshrl.u32 %v135, 7
    %v137 = vsub.s32 0, %v136
    %v138 = vrot.slane %v133, %v137
    %v140 = vmul.f32 %v132, %v138
    %141 = vst [vmem:[#allocation7] sm:$0xf] %v140
    // Predicated region
    $region22: #{tpu_custom_call.1} parent=1 // pred_check
      _
    $region23: #{tpu_custom_call.1} parent=1 // pred_check_branch
      %143 = sbr.rel (0) target = $region25
    $region24: #{tpu_custom_call.1} parent=1 // pred_region
      %s145 = ssub.s32 64, 64
      %146 = vsyncadd [#allocation4], %s145
      %s148 = sshll.u32 [#allocation7], 4
      %s149 = int_to_ptr.vmem [resolvable:$true] %s148
      %151 = dma.vmem_to_hbm [thread:$0]  %s149, 64, %s3, [#allocation4]
    $region25: #{tpu_custom_call.1} parent=1 // pred_fallthru
      _
    // Predicated region
    $region26: #{tpu_custom_call.1} parent=1 // pred_check
      _
    $region27: #{tpu_custom_call.1} parent=1 // pred_check_branch
      %153 = sbr.rel (0) target = $region29
    $region28: #{tpu_custom_call.1} parent=1 // pred_region
      %154 = dma.done [#allocation4], 64
    $region29: #{tpu_custom_call.1} parent=1 // pred_fallthru
      _
    %155 = vsyncpa [#allocation3], 1
    %156 = vsyncpa [#allocation6], 1
    %157 = vsyncpa [#allocation4], 1

</llo_original>
